<compile_context>
chip_gen: v7x
topology: tpu7x:2x2x1
jax: 0.10.0
libtpu: 0.0.40
codegen_flags: <defaults>
</compile_context>

<pallas_src>
import functools

import jax
import jax.numpy as jnp
from jax import lax
from jax.experimental import pallas as pl
from jax.experimental.pallas import tpu as pltpu


def _gather_kernel(vocab, ids_ref, table_ref, out_ref, row_buf, sem):
    # ids_ref:   (B, S) int32 in SMEM (scalar prefetch)
    # table_ref: (H*V, F) in HBM (pl.ANY) -- per-head tables stacked row-wise
    # out_ref:   (1, 1, ts, F) VMEM output block for this (b, h, seq-tile)
    # row_buf:   (ts, F) VMEM scratch
    # sem:       DMA semaphore shared by the ts row copies of this step
    b = pl.program_id(0)
    h = pl.program_id(1)
    si = pl.program_id(2)
    ts = row_buf.shape[0]
    s0 = si * ts
    unroll = ts <= 32

    def issue(t, carry):
        row = h * vocab + ids_ref[b, s0 + t]
        pltpu.make_async_copy(
            table_ref.at[pl.ds(row, 1)], row_buf.at[pl.ds(t, 1)], sem
        ).start()
        return carry

    lax.fori_loop(0, ts, issue, 0, unroll=unroll)

    def drain(t, carry):
        # Dummy src index 0: .wait() only needs matching shapes to account bytes.
        pltpu.make_async_copy(
            table_ref.at[pl.ds(0, 1)], row_buf.at[pl.ds(t, 1)], sem
        ).wait()
        return carry

    lax.fori_loop(0, ts, drain, 0, unroll=unroll)

    out_ref[0, 0] = row_buf[...]


def _pick_seq_tile(S):
    if S <= 64:
        return S  # full dim is always a legal block size
    for ts in (64, 32, 16, 8):
        if S % ts == 0:
            return ts
    return S


def embeddings_forward(seq, tables):
    """seq: (B, S) int, tables: (H, V, F) -> (B, H, S, F) (PyTorch layout)."""
    B, S = seq.shape
    H, V, F = tables.shape
    ts = _pick_seq_tile(S)

    # PyTorch nn.Embedding raises on out-of-range ids; a raw DMA gather would
    # silently read a wrong row, so clamp defensively.
    ids = jnp.clip(seq.astype(jnp.int32), 0, V - 1)
    tables_flat = tables.reshape(H * V, F)  # row (h*V + id) == tables[h, id]

    itemsize = jnp.dtype(tables.dtype).itemsize
    cost = pl.CostEstimate(
        flops=0,
        transcendentals=0,
        bytes_accessed=2 * B * H * S * F * itemsize + B * S * 4,
    )

    return pl.pallas_call(
        functools.partial(_gather_kernel, V),
        out_shape=jax.ShapeDtypeStruct((B, H, S, F), tables.dtype),
        grid_spec=pltpu.PrefetchScalarGridSpec(
            num_scalar_prefetch=1,                 # ids -> SMEM
            grid=(B, H, S // ts),
            in_specs=[pl.BlockSpec(memory_space=pl.ANY)],   # tables stay in HBM
            out_specs=pl.BlockSpec(
                (1, 1, ts, F), lambda b, h, si, ids: (b, h, si, 0)),
            scratch_shapes=[
                pltpu.VMEM((ts, F), tables.dtype),
                pltpu.SemaphoreType.DMA,
            ],
        ),
        compiler_params=pltpu.CompilerParams(
            dimension_semantics=("parallel", "parallel", "parallel")),
        cost_estimate=cost,
    )(ids, tables_flat)


if __name__ == "__main__":
    # Small, deterministic shapes consistent with the module.
    batch, n_heads, n_sequence = 2, 3, 8
    n_vocabulary, n_features = 32, 32

    key = jax.random.PRNGKey(0)
    k_seq, k_tab = jax.random.split(key)

    seq = jax.random.randint(k_seq, (batch, n_sequence), 0, n_vocabulary,
                             dtype=jnp.int32)
    # nn.Embedding default init is N(0, 1)
    tables = jax.random.normal(k_tab, (n_heads, n_vocabulary, n_features),
                               dtype=jnp.float32)

    out = embeddings_forward(seq, tables)
    out = jax.block_until_ready(out)

    # Reference (plain JAX gather), matches torch.stack([emb(seq)], dim=1).
    ref = jnp.stack([tables[h][seq] for h in range(n_heads)], axis=1)
    assert out.shape == (batch, n_heads, n_sequence, n_features), out.shape
    assert jnp.allclose(out, ref), "mismatch vs reference gather"

    print("KERNEL_OK")
</pallas_src>

<mosaic_0001>
module attributes {stable_mosaic.version = 11 : i64} {
  func.func @_gather_kernel(%arg0: i32, %arg1: i32, %arg2: i32, %arg3: memref<2x8xi32, #tpu.memory_space<smem>>, %arg4: memref<96x32xf32, #tpu.memory_space<any>>, %arg5: memref<1x1x8x32xf32, #tpu.memory_space<vmem>>, %arg6: memref<8x32xf32, #tpu.memory_space<vmem>>, %arg7: memref<!tpu.dma_semaphore, #tpu.memory_space<semaphore_mem>>) attributes {dimension_semantics = [#tpu.dimension_semantics<parallel>, #tpu.dimension_semantics<parallel>, #tpu.dimension_semantics<parallel>], iteration_bounds = array<i64: 2, 3, 1>, scalar_prefetch = 1 : i64, scratch_operands = 2 : i64, tpu.core_type = #tpu.core_type<tc>, window_params = [{}, {transform_indices = @transform_1, window_bounds = array<i64: 1, 1, 8, 32>}]} {
    %c8_i32 = arith.constant 8 : i32
    %0 = arith.muli %arg2, %c8_i32 : i32
    %c0_i32 = arith.constant 0 : i32
    %c32_i32 = arith.constant 32 : i32
    %1 = arith.muli %arg1, %c32_i32 : i32
    %2 = arith.addi %0, %c0_i32 : i32
    %3 = arith.index_cast %arg0 : i32 to index
    %4 = arith.index_cast %2 : i32 to index
    %5 = memref.load %arg3[%3, %4] : memref<2x8xi32, #tpu.memory_space<smem>>
    %6 = arith.addi %1, %5 : i32
    %c0_i32_0 = arith.constant 0 : i32
    %7 = tpu.memref_slice %arg4[%6, %c0_i32_0] : memref<96x32xf32, #tpu.memory_space<any>> -> memref<1x32xf32, #tpu.memory_space<any>>
    %c0_i32_1 = arith.constant 0 : i32
    %8 = tpu.memref_slice %arg6[%c0_i32, %c0_i32_1] : memref<8x32xf32, #tpu.memory_space<vmem>> -> memref<1x32xf32, #tpu.memory_space<vmem>>
    tpu.enqueue_dma source(%7 : memref<1x32xf32, #tpu.memory_space<any>>) target(%8 : memref<1x32xf32, #tpu.memory_space<vmem>>) target_semaphore(%arg7 : memref<!tpu.dma_semaphore, #tpu.memory_space<semaphore_mem>>)
    %c1_i32 = arith.constant 1 : i32
    %c32_i32_2 = arith.constant 32 : i32
    %9 = arith.muli %arg1, %c32_i32_2 : i32
    %10 = arith.addi %0, %c1_i32 : i32
    %11 = arith.index_cast %arg0 : i32 to index
    %12 = arith.index_cast %10 : i32 to index
    %13 = memref.load %arg3[%11, %12] : memref<2x8xi32, #tpu.memory_space<smem>>
    %14 = arith.addi %9, %13 : i32
    %c0_i32_3 = arith.constant 0 : i32
    %15 = tpu.memref_slice %arg4[%14, %c0_i32_3] : memref<96x32xf32, #tpu.memory_space<any>> -> memref<1x32xf32, #tpu.memory_space<any>>
    %c0_i32_4 = arith.constant 0 : i32
    %16 = tpu.memref_slice %arg6[%c1_i32, %c0_i32_4] : memref<8x32xf32, #tpu.memory_space<vmem>> -> memref<1x32xf32, #tpu.memory_space<vmem>>
    tpu.enqueue_dma source(%15 : memref<1x32xf32, #tpu.memory_space<any>>) target(%16 : memref<1x32xf32, #tpu.memory_space<vmem>>) target_semaphore(%arg7 : memref<!tpu.dma_semaphore, #tpu.memory_space<semaphore_mem>>)
    %c2_i32 = arith.constant 2 : i32
    %c32_i32_5 = arith.constant 32 : i32
    %17 = arith.muli %arg1, %c32_i32_5 : i32
    %18 = arith.addi %0, %c2_i32 : i32
    %19 = arith.index_cast %arg0 : i32 to index
    %20 = arith.index_cast %18 : i32 to index
    %21 = memref.load %arg3[%19, %20] : memref<2x8xi32, #tpu.memory_space<smem>>
    %22 = arith.addi %17, %21 : i32
    %c0_i32_6 = arith.constant 0 : i32
    %23 = tpu.memref_slice %arg4[%22, %c0_i32_6] : memref<96x32xf32, #tpu.memory_space<any>> -> memref<1x32xf32, #tpu.memory_space<any>>
    %c0_i32_7 = arith.constant 0 : i32
    %24 = tpu.memref_slice %arg6[%c2_i32, %c0_i32_7] : memref<8x32xf32, #tpu.memory_space<vmem>> -> memref<1x32xf32, #tpu.memory_space<vmem>>
    tpu.enqueue_dma source(%23 : memref<1x32xf32, #tpu.memory_space<any>>) target(%24 : memref<1x32xf32, #tpu.memory_space<vmem>>) target_semaphore(%arg7 : memref<!tpu.dma_semaphore, #tpu.memory_space<semaphore_mem>>)
    %c3_i32 = arith.constant 3 : i32
    %c32_i32_8 = arith.constant 32 : i32
    %25 = arith.muli %arg1, %c32_i32_8 : i32
    %26 = arith.addi %0, %c3_i32 : i32
    %27 = arith.index_cast %arg0 : i32 to index
    %28 = arith.index_cast %26 : i32 to index
    %29 = memref.load %arg3[%27, %28] : memref<2x8xi32, #tpu.memory_space<smem>>
    %30 = arith.addi %25, %29 : i32
    %c0_i32_9 = arith.constant 0 : i32
    %31 = tpu.memref_slice %arg4[%30, %c0_i32_9] : memref<96x32xf32, #tpu.memory_space<any>> -> memref<1x32xf32, #tpu.memory_space<any>>
    %c0_i32_10 = arith.constant 0 : i32
    %32 = tpu.memref_slice %arg6[%c3_i32, %c0_i32_10] : memref<8x32xf32, #tpu.memory_space<vmem>> -> memref<1x32xf32, #tpu.memory_space<vmem>>
    tpu.enqueue_dma source(%31 : memref<1x32xf32, #tpu.memory_space<any>>) target(%32 : memref<1x32xf32, #tpu.memory_space<vmem>>) target_semaphore(%arg7 : memref<!tpu.dma_semaphore, #tpu.memory_space<semaphore_mem>>)
    %c4_i32 = arith.constant 4 : i32
    %c32_i32_11 = arith.constant 32 : i32
    %33 = arith.muli %arg1, %c32_i32_11 : i32
    %34 = arith.addi %0, %c4_i32 : i32
    %35 = arith.index_cast %arg0 : i32 to index
    %36 = arith.index_cast %34 : i32 to index
    %37 = memref.load %arg3[%35, %36] : memref<2x8xi32, #tpu.memory_space<smem>>
    %38 = arith.addi %33, %37 : i32
    %c0_i32_12 = arith.constant 0 : i32
    %39 = tpu.memref_slice %arg4[%38, %c0_i32_12] : memref<96x32xf32, #tpu.memory_space<any>> -> memref<1x32xf32, #tpu.memory_space<any>>
    %c0_i32_13 = arith.constant 0 : i32
    %40 = tpu.memref_slice %arg6[%c4_i32, %c0_i32_13] : memref<8x32xf32, #tpu.memory_space<vmem>> -> memref<1x32xf32, #tpu.memory_space<vmem>>
    tpu.enqueue_dma source(%39 : memref<1x32xf32, #tpu.memory_space<any>>) target(%40 : memref<1x32xf32, #tpu.memory_space<vmem>>) target_semaphore(%arg7 : memref<!tpu.dma_semaphore, #tpu.memory_space<semaphore_mem>>)
    %c5_i32 = arith.constant 5 : i32
    %c32_i32_14 = arith.constant 32 : i32
    %41 = arith.muli %arg1, %c32_i32_14 : i32
    %42 = arith.addi %0, %c5_i32 : i32
    %43 = arith.index_cast %arg0 : i32 to index
    %44 = arith.index_cast %42 : i32 to index
    %45 = memref.load %arg3[%43, %44] : memref<2x8xi32, #tpu.memory_space<smem>>
    %46 = arith.addi %41, %45 : i32
    %c0_i32_15 = arith.constant 0 : i32
    %47 = tpu.memref_slice %arg4[%46, %c0_i32_15] : memref<96x32xf32, #tpu.memory_space<any>> -> memref<1x32xf32, #tpu.memory_space<any>>
    %c0_i32_16 = arith.constant 0 : i32
    %48 = tpu.memref_slice %arg6[%c5_i32, %c0_i32_16] : memref<8x32xf32, #tpu.memory_space<vmem>> -> memref<1x32xf32, #tpu.memory_space<vmem>>
    tpu.enqueue_dma source(%47 : memref<1x32xf32, #tpu.memory_space<any>>) target(%48 : memref<1x32xf32, #tpu.memory_space<vmem>>) target_semaphore(%arg7 : memref<!tpu.dma_semaphore, #tpu.memory_space<semaphore_mem>>)
    %c6_i32 = arith.constant 6 : i32
    %c32_i32_17 = arith.constant 32 : i32
    %49 = arith.muli %arg1, %c32_i32_17 : i32
    %50 = arith.addi %0, %c6_i32 : i32
    %51 = arith.index_cast %arg0 : i32 to index
    %52 = arith.index_cast %50 : i32 to index
    %53 = memref.load %arg3[%51, %52] : memref<2x8xi32, #tpu.memory_space<smem>>
    %54 = arith.addi %49, %53 : i32
    %c0_i32_18 = arith.constant 0 : i32
    %55 = tpu.memref_slice %arg4[%54, %c0_i32_18] : memref<96x32xf32, #tpu.memory_space<any>> -> memref<1x32xf32, #tpu.memory_space<any>>
    %c0_i32_19 = arith.constant 0 : i32
    %56 = tpu.memref_slice %arg6[%c6_i32, %c0_i32_19] : memref<8x32xf32, #tpu.memory_space<vmem>> -> memref<1x32xf32, #tpu.memory_space<vmem>>
    tpu.enqueue_dma source(%55 : memref<1x32xf32, #tpu.memory_space<any>>) target(%56 : memref<1x32xf32, #tpu.memory_space<vmem>>) target_semaphore(%arg7 : memref<!tpu.dma_semaphore, #tpu.memory_space<semaphore_mem>>)
    %c7_i32 = arith.constant 7 : i32
    %c32_i32_20 = arith.constant 32 : i32
    %57 = arith.muli %arg1, %c32_i32_20 : i32
    %58 = arith.addi %0, %c7_i32 : i32
    %59 = arith.index_cast %arg0 : i32 to index
    %60 = arith.index_cast %58 : i32 to index
    %61 = memref.load %arg3[%59, %60] : memref<2x8xi32, #tpu.memory_space<smem>>
    %62 = arith.addi %57, %61 : i32
    %c0_i32_21 = arith.constant 0 : i32
    %63 = tpu.memref_slice %arg4[%62, %c0_i32_21] : memref<96x32xf32, #tpu.memory_space<any>> -> memref<1x32xf32, #tpu.memory_space<any>>
    %c0_i32_22 = arith.constant 0 : i32
    %64 = tpu.memref_slice %arg6[%c7_i32, %c0_i32_22] : memref<8x32xf32, #tpu.memory_space<vmem>> -> memref<1x32xf32, #tpu.memory_space<vmem>>
    tpu.enqueue_dma source(%63 : memref<1x32xf32, #tpu.memory_space<any>>) target(%64 : memref<1x32xf32, #tpu.memory_space<vmem>>) target_semaphore(%arg7 : memref<!tpu.dma_semaphore, #tpu.memory_space<semaphore_mem>>)
    %c8_i32_23 = arith.constant 8 : i32
    %c0_i32_24 = arith.constant 0 : i32
    %c0_i32_25 = arith.constant 0 : i32
    %c0_i32_26 = arith.constant 0 : i32
    %65 = tpu.memref_slice %arg4[%c0_i32_25, %c0_i32_26] : memref<96x32xf32, #tpu.memory_space<any>> -> memref<1x32xf32, #tpu.memory_space<any>>
    %c0_i32_27 = arith.constant 0 : i32
    %66 = tpu.memref_slice %arg6[%c0_i32_24, %c0_i32_27] : memref<8x32xf32, #tpu.memory_space<vmem>> -> memref<1x32xf32, #tpu.memory_space<vmem>>
    tpu.wait_dma2 semaphore(%arg7 : memref<!tpu.dma_semaphore, #tpu.memory_space<semaphore_mem>>) src(%65 : memref<1x32xf32, #tpu.memory_space<any>>) dst(%66 : memref<1x32xf32, #tpu.memory_space<vmem>>)
    %c1_i32_28 = arith.constant 1 : i32
    %c0_i32_29 = arith.constant 0 : i32
    %c0_i32_30 = arith.constant 0 : i32
    %67 = tpu.memref_slice %arg4[%c0_i32_29, %c0_i32_30] : memref<96x32xf32, #tpu.memory_space<any>> -> memref<1x32xf32, #tpu.memory_space<any>>
    %c0_i32_31 = arith.constant 0 : i32
    %68 = tpu.memref_slice %arg6[%c1_i32_28, %c0_i32_31] : memref<8x32xf32, #tpu.memory_space<vmem>> -> memref<1x32xf32, #tpu.memory_space<vmem>>
    tpu.wait_dma2 semaphore(%arg7 : memref<!tpu.dma_semaphore, #tpu.memory_space<semaphore_mem>>) src(%67 : memref<1x32xf32, #tpu.memory_space<any>>) dst(%68 : memref<1x32xf32, #tpu.memory_space<vmem>>)
    %c2_i32_32 = arith.constant 2 : i32
    %c0_i32_33 = arith.constant 0 : i32
    %c0_i32_34 = arith.constant 0 : i32
    %69 = tpu.memref_slice %arg4[%c0_i32_33, %c0_i32_34] : memref<96x32xf32, #tpu.memory_space<any>> -> memref<1x32xf32, #tpu.memory_space<any>>
    %c0_i32_35 = arith.constant 0 : i32
    %70 = tpu.memref_slice %arg6[%c2_i32_32, %c0_i32_35] : memref<8x32xf32, #tpu.memory_space<vmem>> -> memref<1x32xf32, #tpu.memory_space<vmem>>
    tpu.wait_dma2 semaphore(%arg7 : memref<!tpu.dma_semaphore, #tpu.memory_space<semaphore_mem>>) src(%69 : memref<1x32xf32, #tpu.memory_space<any>>) dst(%70 : memref<1x32xf32, #tpu.memory_space<vmem>>)
    %c3_i32_36 = arith.constant 3 : i32
    %c0_i32_37 = arith.constant 0 : i32
    %c0_i32_38 = arith.constant 0 : i32
    %71 = tpu.memref_slice %arg4[%c0_i32_37, %c0_i32_38] : memref<96x32xf32, #tpu.memory_space<any>> -> memref<1x32xf32, #tpu.memory_space<any>>
    %c0_i32_39 = arith.constant 0 : i32
    %72 = tpu.memref_slice %arg6[%c3_i32_36, %c0_i32_39] : memref<8x32xf32, #tpu.memory_space<vmem>> -> memref<1x32xf32, #tpu.memory_space<vmem>>
    tpu.wait_dma2 semaphore(%arg7 : memref<!tpu.dma_semaphore, #tpu.memory_space<semaphore_mem>>) src(%71 : memref<1x32xf32, #tpu.memory_space<any>>) dst(%72 : memref<1x32xf32, #tpu.memory_space<vmem>>)
    %c4_i32_40 = arith.constant 4 : i32
    %c0_i32_41 = arith.constant 0 : i32
    %c0_i32_42 = arith.constant 0 : i32
    %73 = tpu.memref_slice %arg4[%c0_i32_41, %c0_i32_42] : memref<96x32xf32, #tpu.memory_space<any>> -> memref<1x32xf32, #tpu.memory_space<any>>
    %c0_i32_43 = arith.constant 0 : i32
    %74 = tpu.memref_slice %arg6[%c4_i32_40, %c0_i32_43] : memref<8x32xf32, #tpu.memory_space<vmem>> -> memref<1x32xf32, #tpu.memory_space<vmem>>
    tpu.wait_dma2 semaphore(%arg7 : memref<!tpu.dma_semaphore, #tpu.memory_space<semaphore_mem>>) src(%73 : memref<1x32xf32, #tpu.memory_space<any>>) dst(%74 : memref<1x32xf32, #tpu.memory_space<vmem>>)
    %c5_i32_44 = arith.constant 5 : i32
    %c0_i32_45 = arith.constant 0 : i32
    %c0_i32_46 = arith.constant 0 : i32
    %75 = tpu.memref_slice %arg4[%c0_i32_45, %c0_i32_46] : memref<96x32xf32, #tpu.memory_space<any>> -> memref<1x32xf32, #tpu.memory_space<any>>
    %c0_i32_47 = arith.constant 0 : i32
    %76 = tpu.memref_slice %arg6[%c5_i32_44, %c0_i32_47] : memref<8x32xf32, #tpu.memory_space<vmem>> -> memref<1x32xf32, #tpu.memory_space<vmem>>
    tpu.wait_dma2 semaphore(%arg7 : memref<!tpu.dma_semaphore, #tpu.memory_space<semaphore_mem>>) src(%75 : memref<1x32xf32, #tpu.memory_space<any>>) dst(%76 : memref<1x32xf32, #tpu.memory_space<vmem>>)
    %c6_i32_48 = arith.constant 6 : i32
    %c0_i32_49 = arith.constant 0 : i32
    %c0_i32_50 = arith.constant 0 : i32
    %77 = tpu.memref_slice %arg4[%c0_i32_49, %c0_i32_50] : memref<96x32xf32, #tpu.memory_space<any>> -> memref<1x32xf32, #tpu.memory_space<any>>
    %c0_i32_51 = arith.constant 0 : i32
    %78 = tpu.memref_slice %arg6[%c6_i32_48, %c0_i32_51] : memref<8x32xf32, #tpu.memory_space<vmem>> -> memref<1x32xf32, #tpu.memory_space<vmem>>
    tpu.wait_dma2 semaphore(%arg7 : memref<!tpu.dma_semaphore, #tpu.memory_space<semaphore_mem>>) src(%77 : memref<1x32xf32, #tpu.memory_space<any>>) dst(%78 : memref<1x32xf32, #tpu.memory_space<vmem>>)
    %c7_i32_52 = arith.constant 7 : i32
    %c0_i32_53 = arith.constant 0 : i32
    %c0_i32_54 = arith.constant 0 : i32
    %79 = tpu.memref_slice %arg4[%c0_i32_53, %c0_i32_54] : memref<96x32xf32, #tpu.memory_space<any>> -> memref<1x32xf32, #tpu.memory_space<any>>
    %c0_i32_55 = arith.constant 0 : i32
    %80 = tpu.memref_slice %arg6[%c7_i32_52, %c0_i32_55] : memref<8x32xf32, #tpu.memory_space<vmem>> -> memref<1x32xf32, #tpu.memory_space<vmem>>
    tpu.wait_dma2 semaphore(%arg7 : memref<!tpu.dma_semaphore, #tpu.memory_space<semaphore_mem>>) src(%79 : memref<1x32xf32, #tpu.memory_space<any>>) dst(%80 : memref<1x32xf32, #tpu.memory_space<vmem>>)
    %c8_i32_56 = arith.constant 8 : i32
    %c0 = arith.constant 0 : index
    %c0_57 = arith.constant 0 : index
    %81 = vector.load %arg6[%c0, %c0_57] : memref<8x32xf32, #tpu.memory_space<vmem>>, vector<8x32xf32>
    %c0_58 = arith.constant 0 : index
    %c0_59 = arith.constant 0 : index
    %c0_60 = arith.constant 0 : index
    %c0_61 = arith.constant 0 : index
    %82 = vector.load %arg5[%c0_58, %c0_59, %c0_60, %c0_61] : memref<1x1x8x32xf32, #tpu.memory_space<vmem>>, vector<1x1x8x32xf32>
    %83 = vector.shape_cast %82 : vector<1x1x8x32xf32> to vector<8x32xf32>
    %84 = vector.shape_cast %81 : vector<8x32xf32> to vector<1x1x8x32xf32>
    tpu.vector_store %arg5[%c0_58, %c0_59, %c0_60, %c0_61], %84 {strides = array<i32>} : memref<1x1x8x32xf32, #tpu.memory_space<vmem>>, vector<1x1x8x32xf32>,
    return
  }
  func.func @transform_1(%arg0: i32, %arg1: i32, %arg2: i32, %arg3: memref<2x8xi32, #tpu.memory_space<smem>>) -> (i32, i32, i32, i32) {
    %c0_i32 = arith.constant 0 : i32
    %c0_i32_0 = arith.constant 0 : i32
    return %arg0, %arg1, %arg2, %c0_i32 : i32, i32, i32, i32
  }
}

</mosaic_0001>

<llo_original>
// kernel: tpu_custom_call.1
$region0: #{tpu_custom_call.1}
  #allocation0 [shape = 'u32[]', space=smem, size = 0x4, offset = 0x4, fixed_abs, tag = 'smem constant byte address 0x4 - core index']
  #allocation1 [shape = 'u32[144,128]{1,0:T(1,128)}', space=vmem, size = 0x12000, scoped, tag = 'internal scratch']
  #allocation2 [shape = 'f32[8,32]{1,0:T(8,128)}', space=vmem, size = 0x1000, scoped, tag = 'scratch operand']
  #allocation3 [shape = 's32[1]{0}', space=sflag, size = 0x4, scoped, tag = 'scratch operand']
  #allocation4 [shape = 's32[1]{0}', space=sflag, size = 0x4, scoped, tag = 'scoped memory for tpu_custom_call.1']
  #allocation5 [shape = 'u8[1024]{0}', space=smem, size = 0x400, scoped, tag = 'prefetched SMEM operand 0']
  #allocation8 [shape = 's32[]', space=sflag, size = 0x4, offset = 0, fixed_abs, tag = 'sflag constant byte address 0x0 - dummy sync flag']
  #allocation9 [shape = 's32[]', space=sflag, size = 0x4, offset = 0, fixed_abs, tag = 'sflag constant byte address 0x0 - dummy sync flag']
  #allocation10 [shape = 's32[]', space=sflag, size = 0x4, offset = 0, fixed_abs, tag = 'sflag constant byte address 0x0 - dummy sync flag']
  #allocation11 [shape = 's32[]', space=sflag, size = 0x4, offset = 0, fixed_abs, tag = 'sflag constant byte address 0x0 - dummy sync flag']
  #allocation12 [shape = 's32[]', space=sflag, size = 0x4, offset = 0, fixed_abs, tag = 'sflag constant byte address 0x0 - dummy sync flag']
  #allocation13 [shape = 's32[]', space=sflag, size = 0x4, offset = 0, fixed_abs, tag = 'sflag constant byte address 0x0 - dummy sync flag']
  #allocation14 [shape = 's32[]', space=sflag, size = 0x4, offset = 0, fixed_abs, tag = 'sflag constant byte address 0x0 - dummy sync flag']
  #allocation15 [shape = 's32[]', space=sflag, size = 0x4, offset = 0, fixed_abs, tag = 'sflag constant byte address 0x0 - dummy sync flag']
  %s0 = inlined_call_operand.vmem [shape: s32[2,8], index: 0, kind: input, shape index: {}]
  %s1 = inlined_call_operand.vmem [shape: f32[96,32], index: 1, kind: input, shape index: {}]
  %s2 = inlined_call_operand.hbm [shape: f32[2,3,8,32], index: 2, kind: output, shape index: {}]
  %s3 = sld [smem:[#allocation0]]
  $region265: #{tpu_custom_call.1} parent=0
    _
  %s5 = ssub.s32 1, %s3
  %s6 = scalar_select 0, %s5, %s3
  %s7 = sshll.u32 %s0, 4
  %s8 = int_to_ptr.vmem [resolvable:$true] %s7
  %10 = dma.vmem_to_smem %s8, 32, [#allocation5], [#allocation4]
  %11 = dma.done [#allocation4], 32
  %12 = sfence
  $region1: #{tpu_custom_call.1} parent=0
    #allocation6 [shape = 'u8[8192]{0}', space=vmem, size = 0x2000, scoped, tag = 'output window, operand 0']
    #allocation7 [shape = 's32[2]{0}', space=sflag, size = 0x8, scoped, tag = 'scoped memory for tpu_custom_call.1']
    %13 = vsyncpa [#allocation7], 0
    %s14 = scalar_lea.sflag [#allocation7], 1
    %15 = vsyncpa %s14, 0
    loop: start=0, step=1, limit=7
    $region2: #{tpu_custom_call.1} parent=1 // loop_pre_header
      _
    $region3: #{tpu_custom_call.1} parent=1 // loop_header
      %s17 = sphi 0, %s21
      %p18 = scmp.ge.s32.totalorder %s17, 7
      %s23 = sphi 0, %s39
      %s24 = sphi 0, %s35
      %s25 = sphi 0, %s31
      %s26 = sphi 0, %s23
      %s27 = sphi 0, %s24
      %s28 = sphi 0, %s25
      %s46 = sphi 0, %s48
      %s49 = sphi 0, %s46
      %s59 = sphi 0, %s49
    $region4: #{tpu_custom_call.1} parent=1 // loop_header_branch
      %20 = sbr.rel (%p18) target = $region8
    $region5: #{tpu_custom_call.1} parent=1 // loop_body
      %s22 = ssub.s32 %s17, 1
      %s29 = sadd.s32 1, %s25
      %p30 = scmp.ge.s32.totalorder %s29, 1
      %s31 = scalar_select %p30, 0, %s29
      %s32 = sadd.s32 1, %s24
      %s33 = scalar_select %p30, %s32, %s24
      %p34 = scmp.ge.s32.totalorder %s33, 3
      %s35 = scalar_select %p34, 0, %s33
      %s36 = sadd.s32 1, %s23
      %s37 = scalar_select %p34, %s36, %s23
      %p38 = scmp.ge.s32.totalorder %s37, 2
      %s39 = scalar_select %p38, 0, %s37
      %s40 = ssub.s32 %s23, %s39
      %s41 = ssub.s32 %s24, %s35
      %s42 = sor.u32 %s40, %s41
      %s43 = ssub.s32 %s25, %s31
      %s44 = sor.u32 %s42, %s43
      %p45 = scmp.eq.s32.totalorder %s44, 0
      %s47 = sadd.s32 %s46, 1
      %s48 = scalar_select %p45, %s46, %s47
      %p50 = pneg %p45
      %p51 = scmp.eq.s32.totalorder %s17, 5
      %p52 = por %p50, %p51
      %p53 = scmp.ne.s32.totalorder %s46, %s49
      %p54 = scmp.eq.s32.totalorder %s17, 0
      %p55 = por %p53, %p54
      %p56 = scmp.ne.s32.totalorder %s46, %s49
      %p57 = scmp.eq.s32.totalorder %s22, 5
      %p58 = por %p56, %p57
      %p60 = scmp.ne.s32.totalorder %s49, %s59
      %p61 = scmp.eq.s32.totalorder %s22, 0
      %p62 = por %p60, %p61
      %p63 = scmp.lt.s32.totalorder %s17, 6
      // Predicated region
      $region9: #{tpu_custom_call.1} parent=5 // pred_check
        %p64 = pneg %p63
      $region10: #{tpu_custom_call.1} parent=5 // pred_check_branch
        %66 = sbr.rel (%p64) target = $region12
      $region11: #{tpu_custom_call.1} parent=5 // pred_region
        %p67 = pneg %p55
        %p68 = pneg %p52
        %s69 = sand.u32 %s46, 1
        %s70 = scalar_lea.sflag [#allocation7], %s69
        %s71 = sand.u32 %s46, 1
        %s72 = smul.addr %s71, 8
        %s73 = scalar_lea.vmem [#allocation6], %s72
        %s74 = smul.u32 %s25, 8
        %s75 = smul.u32 %s24, 32
        %s76 = sshra.s32 %s74, 7
        %s77 = sand.u32 %s74, 127
        %s78 = sadd.s32 %s76, %s23
        %s79 = smul.u32 %s78, 128
        %s80 = sshra.s32 %s74, 7
        %s81 = sand.u32 %s74, 127
        %s82 = sadd.s32 %s79, %s81
        %s83 = sld [smem:[#allocation5 + %s82]]
        %s84 = sadd.s32 %s75, %s83
        %s85 = scalar_lea.vmem %s1, %s84
        %p87 = scmp.lt.u32.totalorder 1, 8
        %p88 = pneg %p87
        // Predicated region
        $region13: #{tpu_custom_call.1} parent=11 // pred_check
          _
        $region14: #{tpu_custom_call.1} parent=11 // pred_check_branch
          %90 = sbr.rel (%p87) target = $region16
        $region15: #{tpu_custom_call.1} parent=11 // pred_region
          %s105 = sand.u32 1, 7
          %p106 = scmp.eq.s32.totalorder %s105, 0
          %p107 = pneg %p106
          // Predicated region
          $region28: #{tpu_custom_call.1} parent=15 // pred_check
            _
          $region29: #{tpu_custom_call.1} parent=15 // pred_check_branch
            %109 = sbr.rel (%p106) target = $region31
          $region30: #{tpu_custom_call.1} parent=15 // pred_region
            %s110 = sand.u32 1, 7
            %s111 = ssub.s32 1, %s110
            %s112 = scalar_lea.vmem %s85, %s111
            %s113 = ssub.s32 1, %s110
            %s114 = scalar_lea.vmem [#allocation2], %s113
            %s115 = sshllo.u32 0, %s110
            loop: start=0, step=1, limit=1
            $region32: #{tpu_custom_call.1} parent=30 // loop_pre_header
              _
            $region33: #{tpu_custom_call.1} parent=30 // loop_header
              %s117 = sphi 0, %s121
              %p118 = scmp.ge.s32.totalorder %s117, 1
              %s122 = sphi %s112, %s112
              %s123 = sphi %s114, %s114
            $region34: #{tpu_custom_call.1} parent=30 // loop_header_branch
              %120 = sbr.rel (%p118) target = $region38
            $region35: #{tpu_custom_call.1} parent=30 // loop_body
              %v124 = vld [vmem:[%s122] sm:%s115]
              %125 = vst [vmem:[%s123] sm:%s115] %v124
            $region36: #{tpu_custom_call.1} parent=30 // loop_footer
              %s121 = sadd.s32 1, %s117
            $region37: #{tpu_custom_call.1} parent=30 // loop_footer_branch
              %116 = sbr.rel target = $region33
            $region38: #{tpu_custom_call.1} parent=30 // loop_exit
              _
          $region31: #{tpu_custom_call.1} parent=15 // pred_fallthru
            _
        $region16: #{tpu_custom_call.1} parent=11 // pred_fallthru
          _
        // Predicated region
        $region17: #{tpu_custom_call.1} parent=11 // pred_check
          %p91 = pneg %p87
        $region18: #{tpu_custom_call.1} parent=11 // pred_check_branch
          %93 = sbr.rel (%p91) target = $region20
        $region19: #{tpu_custom_call.1} parent=11 // pred_region
          %s94 = sshllo.u32 0, 1
          loop: start=0, step=1, limit=1
          $region21: #{tpu_custom_call.1} parent=19 // loop_pre_header
            _
          $region22: #{tpu_custom_call.1} parent=19 // loop_header
            %s96 = sphi 0, %s100
            %p97 = scmp.ge.s32.totalorder %s96, 1
            %s101 = sphi %s85, %s85
            %s102 = sphi [#allocation2], [#allocation2]
          $region23: #{tpu_custom_call.1} parent=19 // loop_header_branch
            %99 = sbr.rel (%p97) target = $region27
          $region24: #{tpu_custom_call.1} parent=19 // loop_body
            %v103 = vld [vmem:[%s101] sm:%s94]
            %104 = vst [vmem:[%s102] sm:%s94] %v103
          $region25: #{tpu_custom_call.1} parent=19 // loop_footer
            %s100 = sadd.s32 1, %s96
          $region26: #{tpu_custom_call.1} parent=19 // loop_footer_branch
            %95 = sbr.rel target = $region22
          $region27: #{tpu_custom_call.1} parent=19 // loop_exit
            _
        $region20: #{tpu_custom_call.1} parent=11 // pred_fallthru
          _
        // Predicated region
        $region39: #{tpu_custom_call.1} parent=11 // pred_check
          _
        $region40: #{tpu_custom_call.1} parent=11 // pred_check_branch
          %128 = sbr.rel (0) target = $region42
        $region41: #{tpu_custom_call.1} parent=11 // pred_region
          %129 = vsyncadd [#allocation3], 16
        $region42: #{tpu_custom_call.1} parent=11 // pred_fallthru
          _
        %s130 = sadd.s32 %s74, 1
        %s131 = sshra.s32 %s130, 7
        %s132 = sand.u32 %s130, 127
        %s133 = sadd.s32 %s131, %s23
        %s134 = smul.u32 %s133, 128
        %s135 = sshra.s32 %s130, 7
        %s136 = sand.u32 %s130, 127
        %s137 = sadd.s32 %s134, %s136
        %s138 = sld [smem:[#allocation5 + %s137]]
        %s139 = sadd.s32 %s75, %s138
        %s140 = scalar_lea.vmem %s1, %s139
        %s141 = scalar_lea.vmem [#allocation2], 1
        %p143 = scmp.lt.u32.totalorder 1, 8
        %p144 = pneg %p143
        // Predicated region
        $region43: #{tpu_custom_call.1} parent=11 // pred_check
          _
        $region44: #{tpu_custom_call.1} parent=11 // pred_check_branch
          %146 = sbr.rel (%p143) target = $region46
        $region45: #{tpu_custom_call.1} parent=11 // pred_region
          %s161 = sand.u32 1, 7
          %p162 = scmp.eq.s32.totalorder %s161, 0
          %p163 = pneg %p162
          // Predicated region
          $region58: #{tpu_custom_call.1} parent=45 // pred_check
            _
          $region59: #{tpu_custom_call.1} parent=45 // pred_check_branch
            %165 = sbr.rel (%p162) target = $region61
          $region60: #{tpu_custom_call.1} parent=45 // pred_region
            %s166 = sand.u32 1, 7
            %s167 = ssub.s32 1, %s166
            %s168 = scalar_lea.vmem %s140, %s167
            %s169 = ssub.s32 1, %s166
            %s170 = scalar_lea.vmem %s141, %s169 [#allocation2]
            %s171 = sshllo.u32 0, %s166
            loop: start=0, step=1, limit=1
            $region62: #{tpu_custom_call.1} parent=60 // loop_pre_header
              _
            $region63: #{tpu_custom_call.1} parent=60 // loop_header
              %s173 = sphi 0, %s177
              %p174 = scmp.ge.s32.totalorder %s173, 1
              %s178 = sphi %s168, %s168
              %s179 = sphi %s170, %s170
            $region64: #{tpu_custom_call.1} parent=60 // loop_header_branch
              %176 = sbr.rel (%p174) target = $region68
            $region65: #{tpu_custom_call.1} parent=60 // loop_body
              %v180 = vld [vmem:[%s178] sm:%s171]
              %181 = vst [vmem:[%s179] sm:%s171] %v180
            $region66: #{tpu_custom_call.1} parent=60 // loop_footer
              %s177 = sadd.s32 1, %s173
            $region67: #{tpu_custom_call.1} parent=60 // loop_footer_branch
              %172 = sbr.rel target = $region63
            $region68: #{tpu_custom_call.1} parent=60 // loop_exit
              _
          $region61: #{tpu_custom_call.1} parent=45 // pred_fallthru
            _
        $region46: #{tpu_custom_call.1} parent=11 // pred_fallthru
          _
        // Predicated region
        $region47: #{tpu_custom_call.1} parent=11 // pred_check
          %p147 = pneg %p143
        $region48: #{tpu_custom_call.1} parent=11 // pred_check_branch
          %149 = sbr.rel (%p147) target = $region50
        $region49: #{tpu_custom_call.1} parent=11 // pred_region
          %s150 = sshllo.u32 0, 1
          loop: start=0, step=1, limit=1
          $region51: #{tpu_custom_call.1} parent=49 // loop_pre_header
            _
          $region52: #{tpu_custom_call.1} parent=49 // loop_header
            %s152 = sphi 0, %s156
            %p153 = scmp.ge.s32.totalorder %s152, 1
            %s157 = sphi %s140, %s140
            %s158 = sphi %s141, %s141
          $region53: #{tpu_custom_call.1} parent=49 // loop_header_branch
            %155 = sbr.rel (%p153) target = $region57
          $region54: #{tpu_custom_call.1} parent=49 // loop_body
            %v159 = vld [vmem:[%s157] sm:%s150]
            %160 = vst [vmem:[%s158] sm:%s150] %v159
          $region55: #{tpu_custom_call.1} parent=49 // loop_footer
            %s156 = sadd.s32 1, %s152
          $region56: #{tpu_custom_call.1} parent=49 // loop_footer_branch
            %151 = sbr.rel target = $region52
          $region57: #{tpu_custom_call.1} parent=49 // loop_exit
            _
        $region50: #{tpu_custom_call.1} parent=11 // pred_fallthru
          _
        // Predicated region
        $region69: #{tpu_custom_call.1} parent=11 // pred_check
          _
        $region70: #{tpu_custom_call.1} parent=11 // pred_check_branch
          %184 = sbr.rel (0) target = $region72
        $region71: #{tpu_custom_call.1} parent=11 // pred_region
          %185 = vsyncadd [#allocation3], 16
        $region72: #{tpu_custom_call.1} parent=11 // pred_fallthru
          _
        %s186 = sadd.s32 %s74, 2
        %s187 = sshra.s32 %s186, 7
        %s188 = sand.u32 %s186, 127
        %s189 = sadd.s32 %s187, %s23
        %s190 = smul.u32 %s189, 128
        %s191 = sshra.s32 %s186, 7
        %s192 = sand.u32 %s186, 127
        %s193 = sadd.s32 %s190, %s192
        %s194 = sld [smem:[#allocation5 + %s193]]
        %s195 = sadd.s32 %s75, %s194
        %s196 = scalar_lea.vmem %s1, %s195
        %s197 = scalar_lea.vmem [#allocation2], 2
        %p199 = scmp.lt.u32.totalorder 1, 8
        %p200 = pneg %p199
        // Predicated region
        $region73: #{tpu_custom_call.1} parent=11 // pred_check
          _
        $region74: #{tpu_custom_call.1} parent=11 // pred_check_branch
          %202 = sbr.rel (%p199) target = $region76
        $region75: #{tpu_custom_call.1} parent=11 // pred_region
          %s217 = sand.u32 1, 7
          %p218 = scmp.eq.s32.totalorder %s217, 0
          %p219 = pneg %p218
          // Predicated region
          $region88: #{tpu_custom_call.1} parent=75 // pred_check
            _
          $region89: #{tpu_custom_call.1} parent=75 // pred_check_branch
            %221 = sbr.rel (%p218) target = $region91
          $region90: #{tpu_custom_call.1} parent=75 // pred_region
            %s222 = sand.u32 1, 7
            %s223 = ssub.s32 1, %s222
            %s224 = scalar_lea.vmem %s196, %s223
            %s225 = ssub.s32 1, %s222
            %s226 = scalar_lea.vmem %s197, %s225 [#allocation2]
            %s227 = sshllo.u32 0, %s222
            loop: start=0, step=1, limit=1
            $region92: #{tpu_custom_call.1} parent=90 // loop_pre_header
              _
            $region93: #{tpu_custom_call.1} parent=90 // loop_header
              %s229 = sphi 0, %s233
              %p230 = scmp.ge.s32.totalorder %s229, 1
              %s234 = sphi %s224, %s224
              %s235 = sphi %s226, %s226
            $region94: #{tpu_custom_call.1} parent=90 // loop_header_branch
              %232 = sbr.rel (%p230) target = $region98
            $region95: #{tpu_custom_call.1} parent=90 // loop_body
              %v236 = vld [vmem:[%s234] sm:%s227]
              %237 = vst [vmem:[%s235] sm:%s227] %v236
            $region96: #{tpu_custom_call.1} parent=90 // loop_footer
              %s233 = sadd.s32 1, %s229
            $region97: #{tpu_custom_call.1} parent=90 // loop_footer_branch
              %228 = sbr.rel target = $region93
            $region98: #{tpu_custom_call.1} parent=90 // loop_exit
              _
          $region91: #{tpu_custom_call.1} parent=75 // pred_fallthru
            _
        $region76: #{tpu_custom_call.1} parent=11 // pred_fallthru
          _
        // Predicated region
        $region77: #{tpu_custom_call.1} parent=11 // pred_check
          %p203 = pneg %p199
        $region78: #{tpu_custom_call.1} parent=11 // pred_check_branch
          %205 = sbr.rel (%p203) target = $region80
        $region79: #{tpu_custom_call.1} parent=11 // pred_region
          %s206 = sshllo.u32 0, 1
          loop: start=0, step=1, limit=1
          $region81: #{tpu_custom_call.1} parent=79 // loop_pre_header
            _
          $region82: #{tpu_custom_call.1} parent=79 // loop_header
            %s208 = sphi 0, %s212
            %p209 = scmp.ge.s32.totalorder %s208, 1
            %s213 = sphi %s196, %s196
            %s214 = sphi %s197, %s197
          $region83: #{tpu_custom_call.1} parent=79 // loop_header_branch
            %211 = sbr.rel (%p209) target = $region87
          $region84: #{tpu_custom_call.1} parent=79 // loop_body
            %v215 = vld [vmem:[%s213] sm:%s206]
            %216 = vst [vmem:[%s214] sm:%s206] %v215
          $region85: #{tpu_custom_call.1} parent=79 // loop_footer
            %s212 = sadd.s32 1, %s208
          $region86: #{tpu_custom_call.1} parent=79 // loop_footer_branch
            %207 = sbr.rel target = $region82
          $region87: #{tpu_custom_call.1} parent=79 // loop_exit
            _
        $region80: #{tpu_custom_call.1} parent=11 // pred_fallthru
          _
        // Predicated region
        $region99: #{tpu_custom_call.1} parent=11 // pred_check
          _
        $region100: #{tpu_custom_call.1} parent=11 // pred_check_branch
          %240 = sbr.rel (0) target = $region102
        $region101: #{tpu_custom_call.1} parent=11 // pred_region
          %241 = vsyncadd [#allocation3], 16
        $region102: #{tpu_custom_call.1} parent=11 // pred_fallthru
          _
        %s242 = sadd.s32 %s74, 3
        %s243 = sshra.s32 %s242, 7
        %s244 = sand.u32 %s242, 127
        %s245 = sadd.s32 %s243, %s23
        %s246 = smul.u32 %s245, 128
        %s247 = sshra.s32 %s242, 7
        %s248 = sand.u32 %s242, 127
        %s249 = sadd.s32 %s246, %s248
        %s250 = sld [smem:[#allocation5 + %s249]]
        %s251 = sadd.s32 %s75, %s250
        %s252 = scalar_lea.vmem %s1, %s251
        %s253 = scalar_lea.vmem [#allocation2], 3
        %p255 = scmp.lt.u32.totalorder 1, 8
        %p256 = pneg %p255
        // Predicated region
        $region103: #{tpu_custom_call.1} parent=11 // pred_check
          _
        $region104: #{tpu_custom_call.1} parent=11 // pred_check_branch
          %258 = sbr.rel (%p255) target = $region106
        $region105: #{tpu_custom_call.1} parent=11 // pred_region
          %s273 = sand.u32 1, 7
          %p274 = scmp.eq.s32.totalorder %s273, 0
          %p275 = pneg %p274
          // Predicated region
          $region118: #{tpu_custom_call.1} parent=105 // pred_check
            _
          $region119: #{tpu_custom_call.1} parent=105 // pred_check_branch
            %277 = sbr.rel (%p274) target = $region121
          $region120: #{tpu_custom_call.1} parent=105 // pred_region
            %s278 = sand.u32 1, 7
            %s279 = ssub.s32 1, %s278
            %s280 = scalar_lea.vmem %s252, %s279
            %s281 = ssub.s32 1, %s278
            %s282 = scalar_lea.vmem %s253, %s281 [#allocation2]
            %s283 = sshllo.u32 0, %s278
            loop: start=0, step=1, limit=1
            $region122: #{tpu_custom_call.1} parent=120 // loop_pre_header
              _
            $region123: #{tpu_custom_call.1} parent=120 // loop_header
              %s285 = sphi 0, %s289
              %p286 = scmp.ge.s32.totalorder %s285, 1
              %s290 = sphi %s280, %s280
              %s291 = sphi %s282, %s282
            $region124: #{tpu_custom_call.1} parent=120 // loop_header_branch
              %288 = sbr.rel (%p286) target = $region128
            $region125: #{tpu_custom_call.1} parent=120 // loop_body
              %v292 = vld [vmem:[%s290] sm:%s283]
              %293 = vst [vmem:[%s291] sm:%s283] %v292
            $region126: #{tpu_custom_call.1} parent=120 // loop_footer
              %s289 = sadd.s32 1, %s285
            $region127: #{tpu_custom_call.1} parent=120 // loop_footer_branch
              %284 = sbr.rel target = $region123
            $region128: #{tpu_custom_call.1} parent=120 // loop_exit
              _
          $region121: #{tpu_custom_call.1} parent=105 // pred_fallthru
            _
        $region106: #{tpu_custom_call.1} parent=11 // pred_fallthru
          _
        // Predicated region
        $region107: #{tpu_custom_call.1} parent=11 // pred_check
          %p259 = pneg %p255
        $region108: #{tpu_custom_call.1} parent=11 // pred_check_branch
          %261 = sbr.rel (%p259) target = $region110
        $region109: #{tpu_custom_call.1} parent=11 // pred_region
          %s262 = sshllo.u32 0, 1
          loop: start=0, step=1, limit=1
          $region111: #{tpu_custom_call.1} parent=109 // loop_pre_header
            _
          $region112: #{tpu_custom_call.1} parent=109 // loop_header
            %s264 = sphi 0, %s268
            %p265 = scmp.ge.s32.totalorder %s264, 1
            %s269 = sphi %s252, %s252
            %s270 = sphi %s253, %s253
          $region113: #{tpu_custom_call.1} parent=109 // loop_header_branch
            %267 = sbr.rel (%p265) target = $region117
          $region114: #{tpu_custom_call.1} parent=109 // loop_body
            %v271 = vld [vmem:[%s269] sm:%s262]
            %272 = vst [vmem:[%s270] sm:%s262] %v271
          $region115: #{tpu_custom_call.1} parent=109 // loop_footer
            %s268 = sadd.s32 1, %s264
          $region116: #{tpu_custom_call.1} parent=109 // loop_footer_branch
            %263 = sbr.rel target = $region112
          $region117: #{tpu_custom_call.1} parent=109 // loop_exit
            _
        $region110: #{tpu_custom_call.1} parent=11 // pred_fallthru
          _
        // Predicated region
        $region129: #{tpu_custom_call.1} parent=11 // pred_check
          _
        $region130: #{tpu_custom_call.1} parent=11 // pred_check_branch
          %296 = sbr.rel (0) target = $region132
        $region131: #{tpu_custom_call.1} parent=11 // pred_region
          %297 = vsyncadd [#allocation3], 16
        $region132: #{tpu_custom_call.1} parent=11 // pred_fallthru
          _
        %s298 = sadd.s32 %s74, 4
        %s299 = sshra.s32 %s298, 7
        %s300 = sand.u32 %s298, 127
        %s301 = sadd.s32 %s299, %s23
        %s302 = smul.u32 %s301, 128
        %s303 = sshra.s32 %s298, 7
        %s304 = sand.u32 %s298, 127
        %s305 = sadd.s32 %s302, %s304
        %s306 = sld [smem:[#allocation5 + %s305]]
        %s307 = sadd.s32 %s75, %s306
        %s308 = scalar_lea.vmem %s1, %s307
        %s309 = scalar_lea.vmem [#allocation2], 4
        %p311 = scmp.lt.u32.totalorder 1, 8
        %p312 = pneg %p311
        // Predicated region
        $region133: #{tpu_custom_call.1} parent=11 // pred_check
          _
        $region134: #{tpu_custom_call.1} parent=11 // pred_check_branch
          %314 = sbr.rel (%p311) target = $region136
        $region135: #{tpu_custom_call.1} parent=11 // pred_region
          %s329 = sand.u32 1, 7
          %p330 = scmp.eq.s32.totalorder %s329, 0
          %p331 = pneg %p330
          // Predicated region
          $region148: #{tpu_custom_call.1} parent=135 // pred_check
            _
          $region149: #{tpu_custom_call.1} parent=135 // pred_check_branch
            %333 = sbr.rel (%p330) target = $region151
          $region150: #{tpu_custom_call.1} parent=135 // pred_region
            %s334 = sand.u32 1, 7
            %s335 = ssub.s32 1, %s334
            %s336 = scalar_lea.vmem %s308, %s335
            %s337 = ssub.s32 1, %s334
            %s338 = scalar_lea.vmem %s309, %s337 [#allocation2]
            %s339 = sshllo.u32 0, %s334
            loop: start=0, step=1, limit=1
            $region152: #{tpu_custom_call.1} parent=150 // loop_pre_header
              _
            $region153: #{tpu_custom_call.1} parent=150 // loop_header
              %s341 = sphi 0, %s345
              %p342 = scmp.ge.s32.totalorder %s341, 1
              %s346 = sphi %s336, %s336
              %s347 = sphi %s338, %s338
            $region154: #{tpu_custom_call.1} parent=150 // loop_header_branch
              %344 = sbr.rel (%p342) target = $region158
            $region155: #{tpu_custom_call.1} parent=150 // loop_body
              %v348 = vld [vmem:[%s346] sm:%s339]
              %349 = vst [vmem:[%s347] sm:%s339] %v348
            $region156: #{tpu_custom_call.1} parent=150 // loop_footer
              %s345 = sadd.s32 1, %s341
            $region157: #{tpu_custom_call.1} parent=150 // loop_footer_branch
              %340 = sbr.rel target = $region153
            $region158: #{tpu_custom_call.1} parent=150 // loop_exit
              _
          $region151: #{tpu_custom_call.1} parent=135 // pred_fallthru
            _
        $region136: #{tpu_custom_call.1} parent=11 // pred_fallthru
          _
        // Predicated region
        $region137: #{tpu_custom_call.1} parent=11 // pred_check
          %p315 = pneg %p311
        $region138: #{tpu_custom_call.1} parent=11 // pred_check_branch
          %317 = sbr.rel (%p315) target = $region140
        $region139: #{tpu_custom_call.1} parent=11 // pred_region
          %s318 = sshllo.u32 0, 1
          loop: start=0, step=1, limit=1
          $region141: #{tpu_custom_call.1} parent=139 // loop_pre_header
            _
          $region142: #{tpu_custom_call.1} parent=139 // loop_header
            %s320 = sphi 0, %s324
            %p321 = scmp.ge.s32.totalorder %s320, 1
            %s325 = sphi %s308, %s308
            %s326 = sphi %s309, %s309
          $region143: #{tpu_custom_call.1} parent=139 // loop_header_branch
            %323 = sbr.rel (%p321) target = $region147
          $region144: #{tpu_custom_call.1} parent=139 // loop_body
            %v327 = vld [vmem:[%s325] sm:%s318]
            %328 = vst [vmem:[%s326] sm:%s318] %v327
          $region145: #{tpu_custom_call.1} parent=139 // loop_footer
            %s324 = sadd.s32 1, %s320
          $region146: #{tpu_custom_call.1} parent=139 // loop_footer_branch
            %319 = sbr.rel target = $region142
          $region147: #{tpu_custom_call.1} parent=139 // loop_exit
            _
        $region140: #{tpu_custom_call.1} parent=11 // pred_fallthru
          _
        // Predicated region
        $region159: #{tpu_custom_call.1} parent=11 // pred_check
          _
        $region160: #{tpu_custom_call.1} parent=11 // pred_check_branch
          %352 = sbr.rel (0) target = $region162
        $region161: #{tpu_custom_call.1} parent=11 // pred_region
          %353 = vsyncadd [#allocation3], 16
        $region162: #{tpu_custom_call.1} parent=11 // pred_fallthru
          _
        %s354 = sadd.s32 %s74, 5
        %s355 = sshra.s32 %s354, 7
        %s356 = sand.u32 %s354, 127
        %s357 = sadd.s32 %s355, %s23
        %s358 = smul.u32 %s357, 128
        %s359 = sshra.s32 %s354, 7
        %s360 = sand.u32 %s354, 127
        %s361 = sadd.s32 %s358, %s360
        %s362 = sld [smem:[#allocation5 + %s361]]
        %s363 = sadd.s32 %s75, %s362
        %s364 = scalar_lea.vmem %s1, %s363
        %s365 = scalar_lea.vmem [#allocation2], 5
        %p367 = scmp.lt.u32.totalorder 1, 8
        %p368 = pneg %p367
        // Predicated region
        $region163: #{tpu_custom_call.1} parent=11 // pred_check
          _
        $region164: #{tpu_custom_call.1} parent=11 // pred_check_branch
          %370 = sbr.rel (%p367) target = $region166
        $region165: #{tpu_custom_call.1} parent=11 // pred_region
          %s385 = sand.u32 1, 7
          %p386 = scmp.eq.s32.totalorder %s385, 0
          %p387 = pneg %p386
          // Predicated region
          $region178: #{tpu_custom_call.1} parent=165 // pred_check
            _
          $region179: #{tpu_custom_call.1} parent=165 // pred_check_branch
            %389 = sbr.rel (%p386) target = $region181
          $region180: #{tpu_custom_call.1} parent=165 // pred_region
            %s390 = sand.u32 1, 7
            %s391 = ssub.s32 1, %s390
            %s392 = scalar_lea.vmem %s364, %s391
            %s393 = ssub.s32 1, %s390
            %s394 = scalar_lea.vmem %s365, %s393 [#allocation2]
            %s395 = sshllo.u32 0, %s390
            loop: start=0, step=1, limit=1
            $region182: #{tpu_custom_call.1} parent=180 // loop_pre_header
              _
            $region183: #{tpu_custom_call.1} parent=180 // loop_header
              %s397 = sphi 0, %s401
              %p398 = scmp.ge.s32.totalorder %s397, 1
              %s402 = sphi %s392, %s392
              %s403 = sphi %s394, %s394
            $region184: #{tpu_custom_call.1} parent=180 // loop_header_branch
              %400 = sbr.rel (%p398) target = $region188
            $region185: #{tpu_custom_call.1} parent=180 // loop_body
              %v404 = vld [vmem:[%s402] sm:%s395]
              %405 = vst [vmem:[%s403] sm:%s395] %v404
            $region186: #{tpu_custom_call.1} parent=180 // loop_footer
              %s401 = sadd.s32 1, %s397
            $region187: #{tpu_custom_call.1} parent=180 // loop_footer_branch
              %396 = sbr.rel target = $region183
            $region188: #{tpu_custom_call.1} parent=180 // loop_exit
              _
          $region181: #{tpu_custom_call.1} parent=165 // pred_fallthru
            _
        $region166: #{tpu_custom_call.1} parent=11 // pred_fallthru
          _
        // Predicated region
        $region167: #{tpu_custom_call.1} parent=11 // pred_check
          %p371 = pneg %p367
        $region168: #{tpu_custom_call.1} parent=11 // pred_check_branch
          %373 = sbr.rel (%p371) target = $region170
        $region169: #{tpu_custom_call.1} parent=11 // pred_region
          %s374 = sshllo.u32 0, 1
          loop: start=0, step=1, limit=1
          $region171: #{tpu_custom_call.1} parent=169 // loop_pre_header
            _
          $region172: #{tpu_custom_call.1} parent=169 // loop_header
            %s376 = sphi 0, %s380
            %p377 = scmp.ge.s32.totalorder %s376, 1
            %s381 = sphi %s364, %s364
            %s382 = sphi %s365, %s365
          $region173: #{tpu_custom_call.1} parent=169 // loop_header_branch
            %379 = sbr.rel (%p377) target = $region177
          $region174: #{tpu_custom_call.1} parent=169 // loop_body
            %v383 = vld [vmem:[%s381] sm:%s374]
            %384 = vst [vmem:[%s382] sm:%s374] %v383
          $region175: #{tpu_custom_call.1} parent=169 // loop_footer
            %s380 = sadd.s32 1, %s376
          $region176: #{tpu_custom_call.1} parent=169 // loop_footer_branch
            %375 = sbr.rel target = $region172
          $region177: #{tpu_custom_call.1} parent=169 // loop_exit
            _
        $region170: #{tpu_custom_call.1} parent=11 // pred_fallthru
          _
        // Predicated region
        $region189: #{tpu_custom_call.1} parent=11 // pred_check
          _
        $region190: #{tpu_custom_call.1} parent=11 // pred_check_branch
          %408 = sbr.rel (0) target = $region192
        $region191: #{tpu_custom_call.1} parent=11 // pred_region
          %409 = vsyncadd [#allocation3], 16
        $region192: #{tpu_custom_call.1} parent=11 // pred_fallthru
          _
        %s410 = sadd.s32 %s74, 6
        %s411 = sshra.s32 %s410, 7
        %s412 = sand.u32 %s410, 127
        %s413 = sadd.s32 %s411, %s23
        %s414 = smul.u32 %s413, 128
        %s415 = sshra.s32 %s410, 7
        %s416 = sand.u32 %s410, 127
        %s417 = sadd.s32 %s414, %s416
        %s418 = sld [smem:[#allocation5 + %s417]]
        %s419 = sadd.s32 %s75, %s418
        %s420 = scalar_lea.vmem %s1, %s419
        %s421 = scalar_lea.vmem [#allocation2], 6
        %p423 = scmp.lt.u32.totalorder 1, 8
        %p424 = pneg %p423
        // Predicated region
        $region193: #{tpu_custom_call.1} parent=11 // pred_check
          _
        $region194: #{tpu_custom_call.1} parent=11 // pred_check_branch
          %426 = sbr.rel (%p423) target = $region196
        $region195: #{tpu_custom_call.1} parent=11 // pred_region
          %s441 = sand.u32 1, 7
          %p442 = scmp.eq.s32.totalorder %s441, 0
          %p443 = pneg %p442
          // Predicated region
          $region208: #{tpu_custom_call.1} parent=195 // pred_check
            _
          $region209: #{tpu_custom_call.1} parent=195 // pred_check_branch
            %445 = sbr.rel (%p442) target = $region211
          $region210: #{tpu_custom_call.1} parent=195 // pred_region
            %s446 = sand.u32 1, 7
            %s447 = ssub.s32 1, %s446
            %s448 = scalar_lea.vmem %s420, %s447
            %s449 = ssub.s32 1, %s446
            %s450 = scalar_lea.vmem %s421, %s449 [#allocation2]
            %s451 = sshllo.u32 0, %s446
            loop: start=0, step=1, limit=1
            $region212: #{tpu_custom_call.1} parent=210 // loop_pre_header
              _
            $region213: #{tpu_custom_call.1} parent=210 // loop_header
              %s453 = sphi 0, %s457
              %p454 = scmp.ge.s32.totalorder %s453, 1
              %s458 = sphi %s448, %s448
              %s459 = sphi %s450, %s450
            $region214: #{tpu_custom_call.1} parent=210 // loop_header_branch
              %456 = sbr.rel (%p454) target = $region218
            $region215: #{tpu_custom_call.1} parent=210 // loop_body
              %v460 = vld [vmem:[%s458] sm:%s451]
              %461 = vst [vmem:[%s459] sm:%s451] %v460
            $region216: #{tpu_custom_call.1} parent=210 // loop_footer
              %s457 = sadd.s32 1, %s453
            $region217: #{tpu_custom_call.1} parent=210 // loop_footer_branch
              %452 = sbr.rel target = $region213
            $region218: #{tpu_custom_call.1} parent=210 // loop_exit
              _
          $region211: #{tpu_custom_call.1} parent=195 // pred_fallthru
            _
        $region196: #{tpu_custom_call.1} parent=11 // pred_fallthru
          _
        // Predicated region
        $region197: #{tpu_custom_call.1} parent=11 // pred_check
          %p427 = pneg %p423
        $region198: #{tpu_custom_call.1} parent=11 // pred_check_branch
          %429 = sbr.rel (%p427) target = $region200
        $region199: #{tpu_custom_call.1} parent=11 // pred_region
          %s430 = sshllo.u32 0, 1
          loop: start=0, step=1, limit=1
          $region201: #{tpu_custom_call.1} parent=199 // loop_pre_header
            _
          $region202: #{tpu_custom_call.1} parent=199 // loop_header
            %s432 = sphi 0, %s436
            %p433 = scmp.ge.s32.totalorder %s432, 1
            %s437 = sphi %s420, %s420
            %s438 = sphi %s421, %s421
          $region203: #{tpu_custom_call.1} parent=199 // loop_header_branch
            %435 = sbr.rel (%p433) target = $region207
          $region204: #{tpu_custom_call.1} parent=199 // loop_body
            %v439 = vld [vmem:[%s437] sm:%s430]
            %440 = vst [vmem:[%s438] sm:%s430] %v439
          $region205: #{tpu_custom_call.1} parent=199 // loop_footer
            %s436 = sadd.s32 1, %s432
          $region206: #{tpu_custom_call.1} parent=199 // loop_footer_branch
            %431 = sbr.rel target = $region202
          $region207: #{tpu_custom_call.1} parent=199 // loop_exit
            _
        $region200: #{tpu_custom_call.1} parent=11 // pred_fallthru
          _
        // Predicated region
        $region219: #{tpu_custom_call.1} parent=11 // pred_check
          _
        $region220: #{tpu_custom_call.1} parent=11 // pred_check_branch
          %464 = sbr.rel (0) target = $region222
        $region221: #{tpu_custom_call.1} parent=11 // pred_region
          %465 = vsyncadd [#allocation3], 16
        $region222: #{tpu_custom_call.1} parent=11 // pred_fallthru
          _
        %s466 = sadd.s32 %s74, 7
        %s467 = sshra.s32 %s466, 7
        %s468 = sand.u32 %s466, 127
        %s469 = sadd.s32 %s467, %s23
        %s470 = smul.u32 %s469, 128
        %s471 = sshra.s32 %s466, 7
        %s472 = sand.u32 %s466, 127
        %s473 = sadd.s32 %s470, %s472
        %s474 = sld [smem:[#allocation5 + %s473]]
        %s475 = sadd.s32 %s75, %s474
        %s476 = scalar_lea.vmem %s1, %s475
        %s477 = scalar_lea.vmem [#allocation2], 7
        %p479 = scmp.lt.u32.totalorder 1, 8
        %p480 = pneg %p479
        // Predicated region
        $region223: #{tpu_custom_call.1} parent=11 // pred_check
          _
        $region224: #{tpu_custom_call.1} parent=11 // pred_check_branch
          %482 = sbr.rel (%p479) target = $region226
        $region225: #{tpu_custom_call.1} parent=11 // pred_region
          %s497 = sand.u32 1, 7
          %p498 = scmp.eq.s32.totalorder %s497, 0
          %p499 = pneg %p498
          // Predicated region
          $region238: #{tpu_custom_call.1} parent=225 // pred_check
            _
          $region239: #{tpu_custom_call.1} parent=225 // pred_check_branch
            %501 = sbr.rel (%p498) target = $region241
          $region240: #{tpu_custom_call.1} parent=225 // pred_region
            %s502 = sand.u32 1, 7
            %s503 = ssub.s32 1, %s502
            %s504 = scalar_lea.vmem %s476, %s503
            %s505 = ssub.s32 1, %s502
            %s506 = scalar_lea.vmem %s477, %s505 [#allocation2]
            %s507 = sshllo.u32 0, %s502
            loop: start=0, step=1, limit=1
            $region242: #{tpu_custom_call.1} parent=240 // loop_pre_header
              _
            $region243: #{tpu_custom_call.1} parent=240 // loop_header
              %s509 = sphi 0, %s513
              %p510 = scmp.ge.s32.totalorder %s509, 1
              %s514 = sphi %s504, %s504
              %s515 = sphi %s506, %s506
            $region244: #{tpu_custom_call.1} parent=240 // loop_header_branch
              %512 = sbr.rel (%p510) target = $region248
            $region245: #{tpu_custom_call.1} parent=240 // loop_body
              %v516 = vld [vmem:[%s514] sm:%s507]
              %517 = vst [vmem:[%s515] sm:%s507] %v516
            $region246: #{tpu_custom_call.1} parent=240 // loop_footer
              %s513 = sadd.s32 1, %s509
            $region247: #{tpu_custom_call.1} parent=240 // loop_footer_branch
              %508 = sbr.rel target = $region243
            $region248: #{tpu_custom_call.1} parent=240 // loop_exit
              _
          $region241: #{tpu_custom_call.1} parent=225 // pred_fallthru
            _
        $region226: #{tpu_custom_call.1} parent=11 // pred_fallthru
          _
        // Predicated region
        $region227: #{tpu_custom_call.1} parent=11 // pred_check
          %p483 = pneg %p479
        $region228: #{tpu_custom_call.1} parent=11 // pred_check_branch
          %485 = sbr.rel (%p483) target = $region230
        $region229: #{tpu_custom_call.1} parent=11 // pred_region
          %s486 = sshllo.u32 0, 1
          loop: start=0, step=1, limit=1
          $region231: #{tpu_custom_call.1} parent=229 // loop_pre_header
            _
          $region232: #{tpu_custom_call.1} parent=229 // loop_header
            %s488 = sphi 0, %s492
            %p489 = scmp.ge.s32.totalorder %s488, 1
            %s493 = sphi %s476, %s476
            %s494 = sphi %s477, %s477
          $region233: #{tpu_custom_call.1} parent=229 // loop_header_branch
            %491 = sbr.rel (%p489) target = $region237
          $region234: #{tpu_custom_call.1} parent=229 // loop_body
            %v495 = vld [vmem:[%s493] sm:%s486]
            %496 = vst [vmem:[%s494] sm:%s486] %v495
          $region235: #{tpu_custom_call.1} parent=229 // loop_footer
            %s492 = sadd.s32 1, %s488
          $region236: #{tpu_custom_call.1} parent=229 // loop_footer_branch
            %487 = sbr.rel target = $region232
          $region237: #{tpu_custom_call.1} parent=229 // loop_exit
            _
        $region230: #{tpu_custom_call.1} parent=11 // pred_fallthru
          _
        // Predicated region
        $region249: #{tpu_custom_call.1} parent=11 // pred_check
          _
        $region250: #{tpu_custom_call.1} parent=11 // pred_check_branch
          %520 = sbr.rel (0) target = $region252
        $region251: #{tpu_custom_call.1} parent=11 // pred_region
          %521 = vsyncadd [#allocation3], 16
        $region252: #{tpu_custom_call.1} parent=11 // pred_fallthru
          _
        %s522 = smul.u32 1, 1
        %s523 = sshll.u32 %s522, 4
        %524 = dma.done [#allocation3], %s523
        %s525 = sshll.u32 %s522, 4
        %526 = dma.done [#allocation3], %s525
        %s527 = sshll.u32 %s522, 4
        %528 = dma.done [#allocation3], %s527
        %s529 = sshll.u32 %s522, 4
        %530 = dma.done [#allocation3], %s529
        %s531 = sshll.u32 %s522, 4
        %532 = dma.done [#allocation3], %s531
        %s533 = sshll.u32 %s522, 4
        %534 = dma.done [#allocation3], %s533
        %s535 = sshll.u32 %s522, 4
        %536 = dma.done [#allocation3], %s535
        %s537 = sshll.u32 %s522, 4
        %538 = dma.done [#allocation3], %s537
        %v539 = vld [vmem:[#allocation2] sm:$0xff]
        %vm540 = vcmask 261120
        %541 = vst.msk [vmem:[%s73] sm:$0xff] %vm540, %v539
        %s542 = sand.u32 %s46, 1
        %s543 = scalar_lea.sflag [#allocation7], %s542
        %s544 = sand.u32 %s46, 1
        %s545 = smul.addr %s544, 8
        %s546 = scalar_lea.vmem [#allocation6], %s545
        // Predicated region
        $region253: #{tpu_custom_call.1} parent=11 // pred_check
          %p547 = pneg %p52
        $region254: #{tpu_custom_call.1} parent=11 // pred_check_branch
          %549 = sbr.rel (%p547) target = $region256
        $region255: #{tpu_custom_call.1} parent=11 // pred_region
          %s551 = ssub.s32 128, 128
          %552 = vsyncadd %s543, %s551
          %s553 = sadd.s32 %s25, %s24
          %s554 = smul.addr %s23, 3
          %s555 = sadd.s32 %s553, %s554
          %s556 = smul.addr %s555, 128
          %s557 = scalar_lea.hbm %s2, %s556
          %s559 = sshll.u32 %s546, 4
          %s560 = int_to_ptr.vmem [resolvable:$true] %s559
          %562 = dma.vmem_to_hbm [thread:$0]  %s560, 128, %s557, %s543
        $region256: #{tpu_custom_call.1} parent=11 // pred_fallthru
          _
      $region12: #{tpu_custom_call.1} parent=5 // pred_fallthru
        _
      %p563 = scmp.le.s32.totalorder 1, %s17
      // Predicated region
      $region257: #{tpu_custom_call.1} parent=5 // pred_check
        %p564 = pneg %p563
      $region258: #{tpu_custom_call.1} parent=5 // pred_check_branch
        %566 = sbr.rel (%p564) target = $region260
      $region259: #{tpu_custom_call.1} parent=5 // pred_region
        %s567 = ssub.s32 %s17, 1
        // Predicated region
        $region261: #{tpu_custom_call.1} parent=259 // pred_check
          %p568 = pneg %p58
        $region262: #{tpu_custom_call.1} parent=259 // pred_check_branch
          %570 = sbr.rel (%p568) target = $region264
        $region263: #{tpu_custom_call.1} parent=259 // pred_region
          %s571 = sand.u32 %s49, 1
          %s572 = scalar_lea.sflag [#allocation7], %s571
          %s573 = sand.u32 %s49, 1
          %s574 = smul.addr %s573, 8
          %s575 = scalar_lea.vmem [#allocation6], %s574
          %576 = dma.done %s572, 128
        $region264: #{tpu_custom_call.1} parent=259 // pred_fallthru
          _
      $region260: #{tpu_custom_call.1} parent=5 // pred_fallthru
        _
    $region6: #{tpu_custom_call.1} parent=1 // loop_footer
      %s21 = sadd.s32 1, %s17
    $region7: #{tpu_custom_call.1} parent=1 // loop_footer_branch
      %16 = sbr.rel target = $region3
    $region8: #{tpu_custom_call.1} parent=1 // loop_exit
      _
    %577 = vsyncpa [#allocation7], 1
    %s578 = scalar_lea.sflag [#allocation7], 1
    %579 = vsyncpa %s578, 1
  %580 = vsyncmov [#allocation3]
  %s581 = vpop.sfrf %580
  %p582 = scmp.eq.s32.totalorder %s581, 0
  %p583 = pneg %p582
  %585 = shalt.err (%p583)

</llo_original>
